<compile_context>
chip_gen: v7x
topology: tpu7x:2x2x1
jax: 0.10.0
libtpu: 0.0.40
codegen_flags: <defaults>
</compile_context>

<pallas_src>
import functools

import jax
import jax.numpy as jnp
from jax.experimental import pallas as pl
from jax.experimental.pallas import tpu as pltpu


_P_MIN = 1e-7


def _per_row_loss(logits, labels, q):
    """Per-sample GCE+ loss for one (TM, C) tile. q is a static Python float."""
    tm, c = logits.shape

    # softmax statistics over the class (lane) axis
    m = jnp.max(logits, axis=1, keepdims=True)                 # (TM, 1)
    e = jnp.exp(logits - m)                                    # (TM, C) EUP
    sumexp = jnp.sum(e, axis=1, keepdims=True)                 # (TM, 1)
    lse = m + jnp.log(sumexp)                                  # (TM, 1)

    # logit of the true class via one-hot select + lane reduction (no gather)
    cls_ids = jax.lax.broadcasted_iota(jnp.int32, (tm, c), 1)
    one_hot = (cls_ids == labels).astype(jnp.float32)          # labels: (TM, 1)
    z_lab = jnp.sum(one_hot * logits, axis=1, keepdims=True)   # (TM, 1)

    logp = z_lab - lse                                         # log p_label
    p_lab = jnp.exp(logp)                                      # p_label
    mae = 1.0 - p_lab                                          # MAE term

    if q == 0:
        ce = lse - z_lab                                       # -log p_label
        return ce + mae
    if q == 1:
        return mae
    pc = jnp.clip(p_lab, _P_MIN, 1.0)
    powq = jnp.exp(q * jnp.log(pc))                            # p^q, per-row
    return (1.0 - powq) / q + mae


def _gce_sum_kernel(labels_ref, logits_ref, out_ref, *, q, tm, n_valid):
    """Accumulate the sum of per-sample losses into a resident (1,1) output."""
    i = pl.program_id(0)

    @pl.when(i == 0)
    def _():
        out_ref[...] = jnp.zeros_like(out_ref)

    logits = logits_ref[...].astype(jnp.float32)
    loss = _per_row_loss(logits, labels_ref[...], q)           # (TM, 1)

    if n_valid is not None:  # mask out zero-padded rows (static branch)
        row = i * tm + jax.lax.broadcasted_iota(jnp.int32, loss.shape, 0)
        loss = jnp.where(row < n_valid, loss, 0.0)

    out_ref[...] += jnp.sum(loss, axis=(0, 1), keepdims=True)


def _gce_rows_kernel(labels_ref, logits_ref, out_ref, *, q):
    """Per-sample loss output (reduction='none')."""
    logits = logits_ref[...].astype(jnp.float32)
    out_ref[...] = _per_row_loss(logits, labels_ref[...], q)


def _round_up(x, m):
    return ((x + m - 1) // m) * m


def _pick_tm(n, c, itemsize):
    # Conservative per-call budget for the double-buffered logits tile so the
    # default scoped VMEM limit (16 MiB on v5e, 32 MiB on v6e/v7x) is safe.
    budget_bytes = 8 * 1024 * 1024
    tm = budget_bytes // max(1, 2 * c * itemsize)
    tm = max(8, min(1024, (tm // 8) * 8))
    return min(tm, _round_up(n, 8))


@functools.partial(jax.jit, static_argnames=("q", "reduction"))
def gceplus_forward(logits, labels, *, q, reduction="mean"):
    if reduction not in ("mean", "none"):
        raise ValueError("reduction should be mean or none")

    n, c = logits.shape
    labels = labels.astype(jnp.int32)

    tm = _pick_tm(n, c, jnp.dtype(logits.dtype).itemsize)
    n_pad = pl.cdiv(n, tm) * tm
    if n_pad != n:
        logits = jnp.pad(logits, ((0, n_pad - n), (0, 0)))
        labels = jnp.pad(labels, (0, n_pad - n))
    labels2d = labels.reshape(n_pad, 1)
    grid = (n_pad // tm,)

    in_specs = [
        pl.BlockSpec((tm, 1), lambda i: (i, 0)),   # labels
        pl.BlockSpec((tm, c), lambda i: (i, 0)),   # logits (full class axis)
    ]

    if reduction == "mean":
        kernel = functools.partial(
            _gce_sum_kernel, q=q, tm=tm,
            n_valid=(n if n_pad != n else None))
        total = pl.pallas_call(
            kernel,
            out_shape=jax.ShapeDtypeStruct((1, 1), jnp.float32),
            grid=grid,
            in_specs=in_specs,
            out_specs=pl.BlockSpec((1, 1), lambda i: (0, 0)),
            compiler_params=pltpu.CompilerParams(
                dimension_semantics=("arbitrary",)),
        )(labels2d, logits)
        return total[0, 0] / n

    per_sample = pl.pallas_call(
        functools.partial(_gce_rows_kernel, q=q),
        out_shape=jax.ShapeDtypeStruct((n_pad, 1), jnp.float32),
        grid=grid,
        in_specs=in_specs,
        out_specs=pl.BlockSpec((tm, 1), lambda i: (i, 0)),
        compiler_params=pltpu.CompilerParams(
            dimension_semantics=("parallel",)),
    )(labels2d, logits)
    return per_sample[:n, 0]


def _q_from_schedule(t, epoch):
    if epoch < 1:
        return 0.0
    elif epoch <= t:
        return float(epoch) / float(t)
    else:
        return 1.0


def pgceplus_forward(logits, labels, *, t, epoch, reduction="mean"):
    """Forward pass matching PyTorch PGCEplus(t, epoch)(logits, labels, reduction)."""
    return gceplus_forward(
        logits, labels, q=_q_from_schedule(t, epoch), reduction=reduction)


def _pgce_reference(logits, labels, t, epoch, reduction="mean"):
    """Pure-JAX reference mirroring the PyTorch module."""
    q = _q_from_schedule(t, epoch)
    num_classes = logits.shape[-1]
    logits = logits.astype(jnp.float32)
    logp = jax.nn.log_softmax(logits, axis=1)
    p = jnp.exp(logp)
    oh = jax.nn.one_hot(labels, num_classes, dtype=jnp.float32)
    p_lab = jnp.sum(oh * p, axis=1)
    mae = 1.0 - p_lab
    if q == 0:
        ce = -jnp.sum(oh * logp, axis=1)
        loss = ce + mae
    elif q == 1:
        loss = mae
    else:
        pc = jnp.clip(p_lab, _P_MIN, 1.0)
        loss = (1.0 - pc ** q) / q + mae
    if reduction == "mean":
        return jnp.mean(loss)
    return loss


if __name__ == "__main__":
    num_classes = 16
    batch = 8
    t = 10

    key = jax.random.PRNGKey(0)
    k1, k2 = jax.random.split(key)
    logits = jax.random.normal(k1, (batch, num_classes), dtype=jnp.float32)
    labels = jax.random.randint(k2, (batch,), 0, num_classes, dtype=jnp.int32)

    # epoch < 1 -> q=0 (CE+MAE); 1<=epoch<=t -> q=epoch/t; epoch>t -> q=1 (MAE)
    for epoch in (0, 5, 13):
        for reduction in ("mean", "none"):
            out = pgceplus_forward(logits, labels, t=t, epoch=epoch,
                                   reduction=reduction)
            out = jax.block_until_ready(out)
            ref = _pgce_reference(logits, labels, t, epoch, reduction)
            assert jnp.allclose(out, ref, rtol=1e-5, atol=1e-5), (
                epoch, reduction, out, ref)

    # batch not a multiple of 8 -> exercises padding + row mask in mean path
    logits2 = jax.random.normal(k1, (12, num_classes), dtype=jnp.float32)
    labels2 = jax.random.randint(k2, (12,), 0, num_classes, dtype=jnp.int32)
    for reduction in ("mean", "none"):
        out = jax.block_until_ready(
            pgceplus_forward(logits2, labels2, t=t, epoch=5, reduction=reduction))
        ref = _pgce_reference(logits2, labels2, t, 5, reduction)
        assert jnp.allclose(out, ref, rtol=1e-5, atol=1e-5), (reduction, out, ref)

    print("KERNEL_OK")
</pallas_src>

<mosaic_0001>
module attributes {stable_mosaic.version = 11 : i64} {
  func.func @_gce_sum_kernel(%arg0: i32, %arg1: memref<8x1xi32, #tpu.memory_space<vmem>>, %arg2: memref<8x16xf32, #tpu.memory_space<vmem>>, %arg3: memref<1x1xf32, #tpu.memory_space<vmem>>) attributes {dimension_semantics = [#tpu.dimension_semantics<arbitrary>], iteration_bounds = array<i64: 1>, scalar_prefetch = 0 : i64, scratch_operands = 0 : i64, tpu.core_type = #tpu.core_type<tc>, window_params = [{transform_indices = @transform_0, window_bounds = array<i64: 8, 1>}, {transform_indices = @transform_1, window_bounds = array<i64: 8, 16>}, {pipeline_mode = #tpu.pipeline_mode<synchronous>, transform_indices = @transform_2, window_bounds = array<i64: 1, 1>}]} {
    %c0_i32 = arith.constant 0 : i32
    %0 = arith.cmpi eq, %arg0, %c0_i32 : i32
    %1 = arith.extui %0 : i1 to i32
    %c0_i32_0 = arith.constant 0 : i32
    %2 = arith.cmpi ne, %1, %c0_i32_0 : i32
    scf.if %2 {
      %cst_12 = arith.constant 0.000000e+00 : f32
      %36 = vector.broadcast %cst_12 : f32 to vector<1x1xf32>
      %c0_13 = arith.constant 0 : index
      %c0_14 = arith.constant 0 : index
      %37 = vector.load %arg3[%c0_13, %c0_14] : memref<1x1xf32, #tpu.memory_space<vmem>>, vector<1x1xf32>
      tpu.vector_store %arg3[%c0_13, %c0_14], %36 {strides = array<i32>} : memref<1x1xf32, #tpu.memory_space<vmem>>, vector<1x1xf32>,
    } else {
    }
    %c0 = arith.constant 0 : index
    %c0_1 = arith.constant 0 : index
    %3 = vector.load %arg2[%c0, %c0_1] : memref<8x16xf32, #tpu.memory_space<vmem>>, vector<8x16xf32>
    %c0_2 = arith.constant 0 : index
    %c0_3 = arith.constant 0 : index
    %4 = vector.load %arg1[%c0_2, %c0_3] : memref<8x1xi32, #tpu.memory_space<vmem>>, vector<8x1xi32>
    %cst = arith.constant dense<0xFF800000> : vector<8xf32>
    %5 = vector.multi_reduction <maximumf>, %3, %cst [1] : vector<8x16xf32> to vector<8xf32>
    %6 = vector.shape_cast %5 : vector<8xf32> to vector<8x1xf32>
    %7 = vector.broadcast %6 : vector<8x1xf32> to vector<8x16xf32>
    %8 = arith.subf %3, %7 : vector<8x16xf32>
    %9 = math.exp %8 : vector<8x16xf32>
    %cst_4 = arith.constant dense<0.000000e+00> : vector<8xf32>
    %10 = vector.multi_reduction <add>, %9, %cst_4 [1] : vector<8x16xf32> to vector<8xf32>
    %11 = vector.shape_cast %10 : vector<8xf32> to vector<8x1xf32>
    %12 = math.log %11 : vector<8x1xf32>
    %13 = arith.addf %6, %12 : vector<8x1xf32>
    %14 = tpu.iota {dimensions = array<i32: 1>} : vector<8x16xi32>
    %15 = vector.broadcast %4 : vector<8x1xi32> to vector<8x16xi32>
    %16 = arith.cmpi eq, %14, %15 : vector<8x16xi32>
    %17 = arith.extui %16 : vector<8x16xi1> to vector<8x16xi32>
    %18 = arith.sitofp %17 : vector<8x16xi32> to vector<8x16xf32>
    %19 = arith.mulf %18, %3 : vector<8x16xf32>
    %cst_5 = arith.constant dense<0.000000e+00> : vector<8xf32>
    %20 = vector.multi_reduction <add>, %19, %cst_5 [1] : vector<8x16xf32> to vector<8xf32>
    %21 = vector.shape_cast %20 : vector<8xf32> to vector<8x1xf32>
    %22 = arith.subf %21, %13 : vector<8x1xf32>
    %23 = math.exp %22 : vector<8x1xf32>
    %cst_6 = arith.constant 1.000000e+00 : f32
    %24 = vector.broadcast %cst_6 : f32 to vector<8x1xf32>
    %25 = arith.subf %24, %23 : vector<8x1xf32>
    %26 = arith.subf %13, %21 : vector<8x1xf32>
    %27 = arith.addf %26, %25 : vector<8x1xf32>
    %c0_7 = arith.constant 0 : index
    %c0_8 = arith.constant 0 : index
    %28 = vector.load %arg3[%c0_7, %c0_8] : memref<1x1xf32, #tpu.memory_space<vmem>>, vector<1x1xf32>
    %29 = vector.shape_cast %27 : vector<8x1xf32> to vector<1x8x1xf32>
    %cst_9 = arith.constant dense<0.000000e+00> : vector<1xf32>
    %30 = vector.multi_reduction <add>, %29, %cst_9 [1, 2] : vector<1x8x1xf32> to vector<1xf32>
    %31 = vector.shape_cast %30 : vector<1xf32> to vector<1x1x1xf32>
    %32 = vector.extract %31[0, 0, 0] : f32 from vector<1x1x1xf32>
    %33 = vector.broadcast %32 : f32 to vector<1x1xf32>
    %34 = arith.addf %28, %33 : vector<1x1xf32>
    %c0_10 = arith.constant 0 : index
    %c0_11 = arith.constant 0 : index
    %35 = vector.load %arg3[%c0_10, %c0_11] : memref<1x1xf32, #tpu.memory_space<vmem>>, vector<1x1xf32>
    tpu.vector_store %arg3[%c0_10, %c0_11], %34 {strides = array<i32>} : memref<1x1xf32, #tpu.memory_space<vmem>>, vector<1x1xf32>,
    return
  }
  func.func @transform_0(%arg0: i32) -> (i32, i32) {
    %c0_i32 = arith.constant 0 : i32
    %c0_i32_0 = arith.constant 0 : i32
    return %arg0, %c0_i32 : i32, i32
  }
  func.func @transform_1(%arg0: i32) -> (i32, i32) {
    %c0_i32 = arith.constant 0 : i32
    %c0_i32_0 = arith.constant 0 : i32
    return %arg0, %c0_i32 : i32, i32
  }
  func.func @transform_2(%arg0: i32) -> (i32, i32) {
    %c0_i32 = arith.constant 0 : i32
    %c0_i32_0 = arith.constant 0 : i32
    %c0_i32_1 = arith.constant 0 : i32
    return %c0_i32, %c0_i32_0 : i32, i32
  }
}

</mosaic_0001>

<llo_original>
// kernel: gceplus_forward.1
$region0: #{gceplus_forward.1}
  #allocation0 [shape = 'u32[]', space=smem, size = 0x4, offset = 0x4, fixed_abs, tag = 'smem constant byte address 0x4 - core index']
  #allocation1 [shape = 'u32[144,128]{1,0:T(1,128)}', space=vmem, size = 0x12000, scoped, tag = 'internal scratch']
  %s0 = inlined_call_operand.vmem [shape: s32[8,1], index: 0, kind: input, shape index: {}]
  %s1 = inlined_call_operand.vmem [shape: f32[8,16], index: 1, kind: input, shape index: {}]
  %s2 = inlined_call_operand.hbm [shape: f32[1,1], index: 2, kind: output, shape index: {}]
  %s3 = sld [smem:[#allocation0]]
  $region22: #{gceplus_forward.1} parent=0
    _
  %s5 = ssub.s32 1, %s3
  %s6 = scalar_select 0, %s5, %s3
  $region1: #{gceplus_forward.1} parent=0
    #allocation2 [shape = 'u8[512]{0}', space=vmem, size = 0x400, scoped, tag = 'output window, operand 0, single buffered']
    #allocation3 [shape = 's32[1]{0}', space=sflag, size = 0x4, scoped, tag = 'scoped memory for gceplus_forward.1']
    %7 = vsyncpa [#allocation3], 0
    // Predicated region
    $region2: #{gceplus_forward.1} parent=1 // pred_check
      _
    $region3: #{gceplus_forward.1} parent=1 // pred_check_branch
      %9 = sbr.rel (0) target = $region5
    $region4: #{gceplus_forward.1} parent=1 // pred_region
      _
    $region5: #{gceplus_forward.1} parent=1 // pred_fallthru
      _
    // Predicated region
    $region6: #{gceplus_forward.1} parent=1 // pred_check
      _
    $region7: #{gceplus_forward.1} parent=1 // pred_check_branch
      %11 = sbr.rel (0) target = $region9
    $region8: #{gceplus_forward.1} parent=1 // pred_region
      _
    $region9: #{gceplus_forward.1} parent=1 // pred_fallthru
      _
    %p12 = scmp.eq.s32.totalorder 0, 0
    // Predicated region
    $region10: #{gceplus_forward.1} parent=1 // pred_check
      %p13 = pneg %p12
    $region11: #{gceplus_forward.1} parent=1 // pred_check_branch
      %15 = sbr.rel (%p13) target = $region13
    $region12: #{gceplus_forward.1} parent=1 // pred_region
      %vm16 = vcmask 0
      %17 = vst.msk [vmem:[#allocation2] sm:$0x1] %vm16, 0.0
    $region13: #{gceplus_forward.1} parent=1 // pred_fallthru
      _
    %v18 = vld [vmem:[%s1] sm:$0xff]
    %v19 = vld [vmem:[%s0] sm:$0xff]
    %vm20 = vcmask 130048
    %v21 = vsel %vm20, %v18, -inf
    %22 = vmax.xlane.f32.xlu0 %v21
    %v23 = vpop.xlane.xlu0 %22
    %v24 = vsub.f32 %v18, %v23
    %v25 = vmul.f32 %v24, 1.442695
    %v26 = vpow.pop %v25
    %v27 = vsel %vm20, %v26, 0.0
    %28 = vadd.xlane.f32.xlu0 %v27
    %v29 = vpop.xlane.xlu0 %28
    %v30 = vlog2.pop %v29
    %v31 = vmul.f32 %v30, 0.6931472
    %v32 = vadd.f32 %v23, %v31
    %v33 = vlaneseq
    %v34 = vand.u32 %v33, 127
    %35 = vset.pattern.permute.xlu0 0
    %36 = vperm.xlu0 %35, %v19
    %v37 = vpop.permute.xlu0 %36
    %vm38 = vcmp.eq.s32.totalorder %v34, %v37
    %v39 = vsel %vm38, 1, 0
    %v40 = vcvt.s32.f32 %v39
    %v41 = vmul.f32 %v40, %v18
    %v42 = vsel %vm20, %v41, 0.0
    %43 = vadd.xlane.f32.xlu0 %v42
    %v44 = vpop.xlane.xlu0 %43
    %v45 = vsub.f32 %v44, %v32
    %v46 = vmul.f32 %v45, 1.442695
    %v47 = vpow.pop %v46
    %v48 = vsub.f32 1.0, %v47
    %v49 = vsub.f32 %v32, %v44
    %v50 = vadd.f32 %v49, %v48
    %v51 = vld [vmem:[#allocation2] sm:$0x1]
    %vm52 = vcmask 7168
    %v53 = vsel %vm52, %v50, 0.0
    %54 = vadd.xlane.f32.xlu0 %v53
    %v55 = vpop.xlane.xlu0 %54
    %v56 = vrot.slane %v55, 4
    %v57 = vadd.f32 %v55, %v56
    %v58 = vrot.slane %v57, 2
    %v59 = vadd.f32 %v57, %v58
    %v60 = vrot.slane %v59, 1
    %v61 = vadd.f32 %v59, %v60
    %s62 = vtos %v61
    %v63 = vstv %s62
    %v64 = vadd.f32 %v51, %v63
    %vm65 = vcmask 0
    %66 = vst.msk [vmem:[#allocation2] sm:$0x1] %vm65, %v64
    // Predicated region
    $region14: #{gceplus_forward.1} parent=1 // pred_check
      _
    $region15: #{gceplus_forward.1} parent=1 // pred_check_branch
      %68 = sbr.rel (0) target = $region17
    $region16: #{gceplus_forward.1} parent=1 // pred_region
      %s70 = ssub.s32 16, 16
      %71 = vsyncadd [#allocation3], %s70
      %s73 = sshll.u32 [#allocation2], 4
      %s74 = int_to_ptr.vmem [resolvable:$true] %s73
      %76 = dma.vmem_to_hbm [thread:$0]  %s74, 16, %s2, [#allocation3]
    $region17: #{gceplus_forward.1} parent=1 // pred_fallthru
      _
    // Predicated region
    $region18: #{gceplus_forward.1} parent=1 // pred_check
      _
    $region19: #{gceplus_forward.1} parent=1 // pred_check_branch
      %78 = sbr.rel (0) target = $region21
    $region20: #{gceplus_forward.1} parent=1 // pred_region
      %79 = dma.done [#allocation3], 16
    $region21: #{gceplus_forward.1} parent=1 // pred_fallthru
      _
    %80 = vsyncpa [#allocation3], 1

</llo_original>
